<compile_context>
chip_gen: v6e
topology: v6e:2x2x1
jax: 0.10.0
libtpu: 0.0.40
codegen_flags: <defaults>
</compile_context>

<pallas_src>
import jax
import jax.numpy as jnp
from jax import lax
from jax.experimental import pallas as pl
from jax.experimental.pallas import tpu as pltpu

LN_EPS = 1e-5  # nn.LayerNorm default
SUBLANE = 8


def _round_up(x, m):
    return ((x + m - 1) // m) * m


def _io_dtype():
    """bf16 HBM I/O on v6e/v7x (f32 accumulate + f32 LN stats in-kernel);
    f32 on v5e and older generations (no bf16 VPU/EUP path)."""
    try:
        kind = jax.devices()[0].device_kind.lower()
    except Exception:
        return jnp.float32
    if ("v6" in kind) or ("v7" in kind) or ("7x" in kind):
        return jnp.bfloat16
    return jnp.float32


def _linear_ln_kernel(x_ref, w_ref, b_ref, gamma_ref, beta_ref, o_ref):
    # x_ref:     (tm, K)  input row tile (io dtype)
    # w_ref:     (K, N)   weight, pre-transposed to [in, out], resident (io dtype)
    # b_ref:     (1, N)   linear bias (f32)
    # gamma_ref: (1, N)   layernorm scale (f32)
    # beta_ref:  (1, N)   layernorm shift (f32)
    # o_ref:     (tm, N)  output row tile (io dtype)
    y = jnp.dot(x_ref[...], w_ref[...], preferred_element_type=jnp.float32)
    y = y + b_ref[...]
    # LayerNorm over the feature (last) axis, all statistics in f32.
    mean = jnp.mean(y, axis=-1, keepdims=True)
    centered = y - mean
    var = jnp.mean(centered * centered, axis=-1, keepdims=True)
    y_norm = centered * lax.rsqrt(var + LN_EPS)
    o_ref[...] = (y_norm * gamma_ref[...] + beta_ref[...]).astype(o_ref.dtype)


def prepare_params(weight, bias, gamma, beta, io_dtype):
    """One-time parameter prep (off the hot path).

    Transposes the PyTorch [out, in] weight to [in, out] (cast to the HBM I/O
    dtype); bias / LN affine params stay f32 for the f32 LN math.
    """
    N, K = weight.shape
    w_t = weight.T.astype(io_dtype)  # [K, N]
    return (
        w_t,
        bias.reshape(1, N).astype(jnp.float32),
        gamma.reshape(1, N).astype(jnp.float32),
        beta.reshape(1, N).astype(jnp.float32),
    )


def _choose_tm(M, K, N, itemsize):
    """Pick the row-tile size (static, trace-time)."""
    if M <= 64:
        # Tiny M (shipped config M=16): one fat sublane-aligned step.
        return _round_up(M, SUBLANE)
    # Moderate / large M: at least 2 grid steps (both v7x TensorCores run),
    # capped at 2048 rows; shrink only if the double-buffered x/out tiles plus
    # the resident weight would blow a conservative (v7x-safe) VMEM budget.
    tm = min(2048, _round_up(pl.cdiv(M, 2), SUBLANE))
    budget = 40 << 20
    while tm > SUBLANE and 2 * itemsize * (tm * (K + N) + K * N) > budget:
        tm = _round_up(tm // 2, SUBLANE)
    return max(tm, SUBLANE)


@jax.jit
def linear_projection(features, w_t, b2d, g2d, be2d):
    """features: [B, T, K]; w_t: [K, N] pre-transposed weight."""
    B, T, K = features.shape
    Kw, N = w_t.shape
    assert K == Kw
    M = B * T
    io_dtype = w_t.dtype

    tm = _choose_tm(M, K, N, jnp.dtype(io_dtype).itemsize)
    grid = (pl.cdiv(M, tm),)

    # Flatten (+ cast to the HBM I/O dtype). No K or M padding: the ragged
    # last tile reads unspecified rows (LayerNorm is row-independent) and its
    # out-of-bounds output rows are masked on store.
    x2d = features.reshape(M, K).astype(io_dtype)

    bpe = jnp.dtype(io_dtype).itemsize
    # Double-buffered x/out tiles + resident weight (2 bufs) + tiny params,
    # plus headroom; capped well under v7x's 64 MiB VMEM.
    vmem_bytes = 2 * bpe * (tm * (K + N) + K * N) + 6 * 4 * N + (4 << 20)
    vmem_bytes = int(min(max(vmem_bytes, 8 << 20), 40 << 20))

    out2d = pl.pallas_call(
        _linear_ln_kernel,
        out_shape=jax.ShapeDtypeStruct((M, N), io_dtype),
        grid_spec=pltpu.PrefetchScalarGridSpec(
            num_scalar_prefetch=0,
            grid=grid,
            in_specs=[
                pl.BlockSpec((tm, K), lambda i: (i, 0)),   # x row tile
                pl.BlockSpec((K, N), lambda i: (0, 0)),    # weight (resident)
                pl.BlockSpec((1, N), lambda i: (0, 0)),    # bias
                pl.BlockSpec((1, N), lambda i: (0, 0)),    # ln gamma
                pl.BlockSpec((1, N), lambda i: (0, 0)),    # ln beta
            ],
            out_specs=pl.BlockSpec((tm, N), lambda i: (i, 0)),
        ),
        compiler_params=pltpu.CompilerParams(
            dimension_semantics=("parallel",),
            vmem_limit_bytes=vmem_bytes,
        ),
    )(x2d, w_t, b2d, g2d, be2d)

    return out2d.reshape(B, T, N)


def reference(features, weight, bias, gamma, beta):
    y = jnp.einsum("btk,nk->btn", features, weight) + bias
    mean = jnp.mean(y, axis=-1, keepdims=True)
    var = jnp.mean((y - mean) ** 2, axis=-1, keepdims=True)
    return (y - mean) / jnp.sqrt(var + LN_EPS) * gamma + beta


if __name__ == "__main__":
    # config['linear_layer'] = {'in_features': 32, 'out_features': 128}
    batch_size = 2
    num_query_tokens = 8
    in_features = 32
    out_features = 128

    key = jax.random.PRNGKey(0)
    k_x, k_w, k_b = jax.random.split(key, 3)

    features = jax.random.normal(
        k_x, (batch_size, num_query_tokens, in_features), dtype=jnp.float32
    )
    # Deterministic parameter init (synthetic, not a checkpoint load).
    bound = 1.0 / (in_features ** 0.5)
    weight = jax.random.uniform(
        k_w, (out_features, in_features), minval=-bound, maxval=bound,
        dtype=jnp.float32
    )
    bias = jax.random.uniform(
        k_b, (out_features,), minval=-bound, maxval=bound, dtype=jnp.float32
    )
    gamma = jnp.ones((out_features,), dtype=jnp.float32)  # nn.LayerNorm init
    beta = jnp.zeros((out_features,), dtype=jnp.float32)

    io_dtype = _io_dtype()

    # One-time parameter prep (transpose + dtype) off the hot path.
    w_t, b2d, g2d, be2d = prepare_params(weight, bias, gamma, beta, io_dtype)
    w_t, b2d, g2d, be2d = jax.block_until_ready((w_t, b2d, g2d, be2d))

    out = linear_projection(features, w_t, b2d, g2d, be2d)
    out = jax.block_until_ready(out)

    ref = reference(features, weight, bias, gamma, beta)
    assert out.shape == (batch_size, num_query_tokens, out_features)
    tol = 3e-2 if io_dtype == jnp.bfloat16 else 1e-4
    assert jnp.allclose(out.astype(jnp.float32), ref, atol=tol, rtol=tol)

    print("KERNEL_OK")
</pallas_src>

<mosaic_0001>
module attributes {stable_mosaic.version = 11 : i64} {
  func.func @_linear_ln_kernel(%arg0: i32, %arg1: memref<16x32xf32, #tpu.memory_space<vmem>>, %arg2: memref<32x128xf32, #tpu.memory_space<vmem>>, %arg3: memref<1x128xf32, #tpu.memory_space<vmem>>, %arg4: memref<1x128xf32, #tpu.memory_space<vmem>>, %arg5: memref<1x128xf32, #tpu.memory_space<vmem>>, %arg6: memref<16x128xf32, #tpu.memory_space<vmem>>) attributes {dimension_semantics = [#tpu.dimension_semantics<parallel>], iteration_bounds = array<i64: 1>, scalar_prefetch = 0 : i64, scratch_operands = 0 : i64, tpu.core_type = #tpu.core_type<tc>, window_params = [{transform_indices = @transform_0, window_bounds = array<i64: 16, 32>}, {pipeline_mode = #tpu.pipeline_mode<synchronous>, transform_indices = @transform_1, window_bounds = array<i64: 32, 128>}, {pipeline_mode = #tpu.pipeline_mode<synchronous>, transform_indices = @transform_2, window_bounds = array<i64: 1, 128>}, {pipeline_mode = #tpu.pipeline_mode<synchronous>, transform_indices = @transform_3, window_bounds = array<i64: 1, 128>}, {pipeline_mode = #tpu.pipeline_mode<synchronous>, transform_indices = @transform_4, window_bounds = array<i64: 1, 128>}, {transform_indices = @transform_5, window_bounds = array<i64: 16, 128>}]} {
    %c0 = arith.constant 0 : index
    %c0_0 = arith.constant 0 : index
    %0 = vector.load %arg1[%c0, %c0_0] : memref<16x32xf32, #tpu.memory_space<vmem>>, vector<16x32xf32>
    %c0_1 = arith.constant 0 : index
    %c0_2 = arith.constant 0 : index
    %1 = vector.load %arg2[%c0_1, %c0_2] : memref<32x128xf32, #tpu.memory_space<vmem>>, vector<32x128xf32>
    %cst = arith.constant dense<0.000000e+00> : vector<16x128xf32>
    %2 = tpu.matmul %0, %1, %cst {dimension_numbers = #tpu.dot_dimension_numbers<[1], [0], [0], [1], [0, 0, 1, 1], [], []>} : vector<16x32xf32>, vector<32x128xf32>, vector<16x128xf32> -> vector<16x128xf32>
    %c0_3 = arith.constant 0 : index
    %c0_4 = arith.constant 0 : index
    %3 = vector.load %arg3[%c0_3, %c0_4] : memref<1x128xf32, #tpu.memory_space<vmem>>, vector<1x128xf32>
    %4 = vector.broadcast %3 : vector<1x128xf32> to vector<16x128xf32>
    %5 = arith.addf %2, %4 : vector<16x128xf32>
    %cst_5 = arith.constant dense<0.000000e+00> : vector<16xf32>
    %6 = vector.multi_reduction <add>, %5, %cst_5 [1] : vector<16x128xf32> to vector<16xf32>
    %7 = vector.shape_cast %6 : vector<16xf32> to vector<16x1xf32>
    %cst_6 = arith.constant 1.280000e+02 : f32
    %8 = vector.broadcast %cst_6 : f32 to vector<16x1xf32>
    %9 = arith.divf %7, %8 : vector<16x1xf32>
    %10 = vector.broadcast %9 : vector<16x1xf32> to vector<16x128xf32>
    %11 = arith.subf %5, %10 : vector<16x128xf32>
    %12 = arith.mulf %11, %11 : vector<16x128xf32>
    %cst_7 = arith.constant dense<0.000000e+00> : vector<16xf32>
    %13 = vector.multi_reduction <add>, %12, %cst_7 [1] : vector<16x128xf32> to vector<16xf32>
    %14 = vector.shape_cast %13 : vector<16xf32> to vector<16x1xf32>
    %cst_8 = arith.constant 1.280000e+02 : f32
    %15 = vector.broadcast %cst_8 : f32 to vector<16x1xf32>
    %16 = arith.divf %14, %15 : vector<16x1xf32>
    %cst_9 = arith.constant 9.99999974E-6 : f32
    %17 = vector.broadcast %cst_9 : f32 to vector<16x1xf32>
    %18 = arith.addf %16, %17 : vector<16x1xf32>
    %19 = math.rsqrt %18 : vector<16x1xf32>
    %20 = vector.broadcast %19 : vector<16x1xf32> to vector<16x128xf32>
    %21 = arith.mulf %11, %20 : vector<16x128xf32>
    %c0_10 = arith.constant 0 : index
    %c0_11 = arith.constant 0 : index
    %22 = vector.load %arg4[%c0_10, %c0_11] : memref<1x128xf32, #tpu.memory_space<vmem>>, vector<1x128xf32>
    %23 = vector.broadcast %22 : vector<1x128xf32> to vector<16x128xf32>
    %24 = arith.mulf %21, %23 : vector<16x128xf32>
    %c0_12 = arith.constant 0 : index
    %c0_13 = arith.constant 0 : index
    %25 = vector.load %arg5[%c0_12, %c0_13] : memref<1x128xf32, #tpu.memory_space<vmem>>, vector<1x128xf32>
    %26 = vector.broadcast %25 : vector<1x128xf32> to vector<16x128xf32>
    %27 = arith.addf %24, %26 : vector<16x128xf32>
    %c0_14 = arith.constant 0 : index
    %c0_15 = arith.constant 0 : index
    %28 = vector.load %arg6[%c0_14, %c0_15] : memref<16x128xf32, #tpu.memory_space<vmem>>, vector<16x128xf32>
    tpu.vector_store %arg6[%c0_14, %c0_15], %27 {strides = array<i32>} : memref<16x128xf32, #tpu.memory_space<vmem>>, vector<16x128xf32>,
    return
  }
  func.func @transform_0(%arg0: i32) -> (i32, i32) {
    %c0_i32 = arith.constant 0 : i32
    %c0_i32_0 = arith.constant 0 : i32
    return %arg0, %c0_i32 : i32, i32
  }
  func.func @transform_1(%arg0: i32) -> (i32, i32) {
    %c0_i32 = arith.constant 0 : i32
    %c0_i32_0 = arith.constant 0 : i32
    %c0_i32_1 = arith.constant 0 : i32
    return %c0_i32, %c0_i32_0 : i32, i32
  }
  func.func @transform_2(%arg0: i32) -> (i32, i32) {
    %c0_i32 = arith.constant 0 : i32
    %c0_i32_0 = arith.constant 0 : i32
    %c0_i32_1 = arith.constant 0 : i32
    return %c0_i32, %c0_i32_0 : i32, i32
  }
  func.func @transform_3(%arg0: i32) -> (i32, i32) {
    %c0_i32 = arith.constant 0 : i32
    %c0_i32_0 = arith.constant 0 : i32
    %c0_i32_1 = arith.constant 0 : i32
    return %c0_i32, %c0_i32_0 : i32, i32
  }
  func.func @transform_4(%arg0: i32) -> (i32, i32) {
    %c0_i32 = arith.constant 0 : i32
    %c0_i32_0 = arith.constant 0 : i32
    %c0_i32_1 = arith.constant 0 : i32
    return %c0_i32, %c0_i32_0 : i32, i32
  }
  func.func @transform_5(%arg0: i32) -> (i32, i32) {
    %c0_i32 = arith.constant 0 : i32
    %c0_i32_0 = arith.constant 0 : i32
    return %arg0, %c0_i32 : i32, i32
  }
}

</mosaic_0001>

<llo_original>
// kernel: linear_projection.1
$region0: #{linear_projection.1}
  #allocation0 [shape = 'u32[]', space=smem, size = 0x4, offset = 0x4, fixed_abs, tag = 'smem constant byte address 0x4 - core index']
  #allocation1 [shape = 'u32[144,128]{1,0:T(1,128)}', space=vmem, size = 0x12000, scoped, tag = 'internal scratch']
  %s0 = inlined_call_operand.hbm [shape: f32[16,32], index: 0, kind: input, shape index: {}]
  %s1 = inlined_call_operand.hbm [shape: f32[32,128], index: 1, kind: input, shape index: {}]
  %s2 = inlined_call_operand.vmem [shape: f32[1,128], index: 2, kind: input, shape index: {}]
  %s3 = inlined_call_operand.vmem [shape: f32[1,128], index: 3, kind: input, shape index: {}]
  %s4 = inlined_call_operand.vmem [shape: f32[1,128], index: 4, kind: input, shape index: {}]
  %s5 = inlined_call_operand.hbm [shape: f32[16,128], index: 5, kind: output, shape index: {}]
  %s6 = sld [smem:[#allocation0]]
  $region38: #{linear_projection.1} parent=0
    _
  %s8 = ssub.s32 1, %s6
  %s9 = scalar_select 0, %s8, %s6
  $region1: #{linear_projection.1} parent=0
    #allocation2 [shape = 'u8[8192]{0}', space=vmem, size = 0x2000, scoped, tag = 'input window, operand 0, single buffered']
    #allocation3 [shape = 's32[1]{0}', space=sflag, size = 0x4, scoped, tag = 'scoped memory for linear_projection.1']
    #allocation4 [shape = 's32[1]{0}', space=sflag, size = 0x4, scoped, tag = 'scoped memory for linear_projection.1']
    #allocation5 [shape = 'u8[16384]{0}', space=vmem, size = 0x4000, scoped, tag = 'input window, operand 1, single buffered']
    #allocation6 [shape = 's32[1]{0}', space=sflag, size = 0x4, scoped, tag = 'scoped memory for linear_projection.1']
    #allocation7 [shape = 'u8[8192]{0}', space=vmem, size = 0x2000, scoped, tag = 'output window, operand 0, single buffered']
    %10 = vsyncpa [#allocation3], 0
    %11 = vsyncpa [#allocation6], 0
    %12 = vsyncpa [#allocation4], 0
    // Predicated region
    $region2: #{linear_projection.1} parent=1 // pred_check
      _
    $region3: #{linear_projection.1} parent=1 // pred_check_branch
      %14 = sbr.rel (0) target = $region5
    $region4: #{linear_projection.1} parent=1 // pred_region
      %s16 = ssub.s32 256, 256
      %17 = vsyncadd [#allocation3], %s16
      %s18 = sshll.u32 [#allocation2], 4
      %s19 = int_to_ptr.vmem [resolvable:$true] %s18
      %24 = dma.hbm_to_vmem [thread:$0]  %s0, 256, %s19, [#allocation3], 128, 128, 8
    $region5: #{linear_projection.1} parent=1 // pred_fallthru
      _
    // Predicated region
    $region6: #{linear_projection.1} parent=1 // pred_check
      _
    $region7: #{linear_projection.1} parent=1 // pred_check_branch
      %26 = sbr.rel (0) target = $region9
    $region8: #{linear_projection.1} parent=1 // pred_region
      %s28 = ssub.s32 512, 512
      %29 = vsyncadd [#allocation6], %s28
      %s30 = sshll.u32 [#allocation5], 4
      %s31 = int_to_ptr.vmem [resolvable:$true] %s30
      %36 = dma.hbm_to_vmem [thread:$0]  %s1, 512, %s31, [#allocation6], 128, 128, 8
    $region9: #{linear_projection.1} parent=1 // pred_fallthru
      _
    // Predicated region
    $region10: #{linear_projection.1} parent=1 // pred_check
      _
    $region11: #{linear_projection.1} parent=1 // pred_check_branch
      %38 = sbr.rel (0) target = $region13
    $region12: #{linear_projection.1} parent=1 // pred_region
      _
    $region13: #{linear_projection.1} parent=1 // pred_fallthru
      _
    // Predicated region
    $region14: #{linear_projection.1} parent=1 // pred_check
      _
    $region15: #{linear_projection.1} parent=1 // pred_check_branch
      %40 = sbr.rel (0) target = $region17
    $region16: #{linear_projection.1} parent=1 // pred_region
      _
    $region17: #{linear_projection.1} parent=1 // pred_fallthru
      _
    // Predicated region
    $region18: #{linear_projection.1} parent=1 // pred_check
      _
    $region19: #{linear_projection.1} parent=1 // pred_check_branch
      %42 = sbr.rel (0) target = $region21
    $region20: #{linear_projection.1} parent=1 // pred_region
      _
    $region21: #{linear_projection.1} parent=1 // pred_fallthru
      _
    // Predicated region
    $region22: #{linear_projection.1} parent=1 // pred_check
      _
    $region23: #{linear_projection.1} parent=1 // pred_check_branch
      %44 = sbr.rel (0) target = $region25
    $region24: #{linear_projection.1} parent=1 // pred_region
      %45 = dma.done [#allocation3], 256
    $region25: #{linear_projection.1} parent=1 // pred_fallthru
      _
    // Predicated region
    $region26: #{linear_projection.1} parent=1 // pred_check
      _
    $region27: #{linear_projection.1} parent=1 // pred_check_branch
      %47 = sbr.rel (0) target = $region29
    $region28: #{linear_projection.1} parent=1 // pred_region
      %48 = dma.done [#allocation6], 512
    $region29: #{linear_projection.1} parent=1 // pred_fallthru
      _
    %v49 = vld [vmem:[#allocation2] sm:$0xff]
    %v50 = vld [vmem:[#allocation2 + $0x8] sm:$0xff]
    %v51 = vld [vmem:[#allocation5] sm:$0xff]
    %v52 = vld [vmem:[#allocation5 + $0x8] sm:$0xff]
    %v53 = vld [vmem:[#allocation5 + $0x10] sm:$0xff]
    %v54 = vld [vmem:[#allocation5 + $0x18] sm:$0xff]
    %v55 = vld [vmem:[%s2] sm:$0x1]
    %v57 = vlaneseq
    %v58 = vshrl.u32 %v57, 7
    %v59 = vsub.s32 0, %v58
    %v60 = vrot.slane %v55, %v59
    %vm62 = vcmask 261120
    %v64 = vsel %vm62, %v49, 0
    %v67 = vsel %vm62, %v50, 0
    %69 = vmatprep.subr.mxu0 0.0
    %70 = vmatpush1.msra.mxu0 0.0
    %71 = vmatprep.subr.mxu0 0.0
    %72 = vmatpush1.msra.mxu0 0.0
    %73 = vmatprep.subr.mxu0 0.0
    %74 = vmatpush1.msra.mxu0 0.0
    %75 = vmatprep.subr.mxu0 0.0
    %76 = vmatpush1.msra.mxu0 0.0
    %77 = vmatprep.subr.mxu0 0.0
    %78 = vmatpush1.msra.mxu0 0.0
    %79 = vmatprep.subr.mxu0 0.0
    %80 = vmatpush1.msra.mxu0 0.0
    %81 = vmatprep.subr.mxu0 0.0
    %82 = vmatpush1.msra.mxu0 0.0
    %83 = vmatprep.subr.mxu0 0.0
    %84 = vmatpush1.msra.mxu0 0.0
    %85 = vmatprep.subr.mxu0 0.0
    %86 = vmatpush1.msra.mxu0 0.0
    %87 = vmatprep.subr.mxu0 0.0
    %88 = vmatpush1.msra.mxu0 0.0
    %89 = vmatprep.subr.mxu0 0.0
    %90 = vmatpush1.msra.mxu0 0.0
    %91 = vmatprep.subr.mxu0 0.0
    %92 = vmatpush1.msra.mxu0 0.0
    %93 = vmatprep.subr.mxu0 0.0
    %94 = vmatpush1.msra.mxu0 %v54
    %95 = vmatprep.subr.mxu0 0.0
    %96 = vmatpush1.msra.mxu0 %v53
    %97 = vmatprep.subr.mxu0 0.0
    %98 = vmatpush1.msra.mxu0 %v52
    %99 = vmatprep.subr.mxu0 0.0
    %100 = vmatpush1.msra.mxu0 %v51
    %101 = vmatprep.subr.mxu0 0.0
    %102 = vmatpush2.msra.mxu0 0.0
    %103 = vmatprep.subr.mxu0 0.0
    %104 = vmatpush2.msra.mxu0 0.0
    %105 = vmatprep.subr.mxu0 0.0
    %106 = vmatpush2.msra.mxu0 0.0
    %107 = vmatprep.subr.mxu0 0.0
    %108 = vmatpush2.msra.mxu0 0.0
    %109 = vmatprep.subr.mxu0 0.0
    %110 = vmatpush2.msra.mxu0 0.0
    %111 = vmatprep.subr.mxu0 0.0
    %112 = vmatpush2.msra.mxu0 0.0
    %113 = vmatprep.subr.mxu0 0.0
    %114 = vmatpush2.msra.mxu0 0.0
    %115 = vmatprep.subr.mxu0 0.0
    %116 = vmatpush2.msra.mxu0 0.0
    %117 = vmatprep.subr.mxu0 0.0
    %118 = vmatpush2.msra.mxu0 0.0
    %119 = vmatprep.subr.mxu0 0.0
    %120 = vmatpush2.msra.mxu0 0.0
    %121 = vmatprep.subr.mxu0 0.0
    %122 = vmatpush2.msra.mxu0 0.0
    %123 = vmatprep.subr.mxu0 0.0
    %124 = vmatpush2.msra.mxu0 0.0
    %125 = vmatprep.subr.mxu0 0.0
    %126 = vmatpush2.msra.mxu0 0.0
    %127 = vmatprep.subr.mxu0 0.0
    %128 = vmatpush2.msra.mxu0 0.0
    %129 = vmatprep.subr.mxu0 0.0
    %130 = vmatpush2.msra.mxu0 0.0
    %131 = vmatprep.subr.mxu0 0.0
    %132 = vmatpush2.msra.mxu0 0.0
    %133 = vmatprep.mubr.f32.mxu0 0.0
    %134 = vmatmul.mubr.f32.gmra.mxu0 %v64
    %v135 = vpop.f32.mrf.mxu0
    %v136 = vadd.f32 %v60, %v135
    %v137 = vpop.f32.mrf.mxu0
    %138 = vmatprep.mubr.f32.mxu0 0.0
    %139 = vmatmul.mubr.f32.gmra.mxu0 %v67
    %v140 = vpop.f32.mrf.mxu0
    %v141 = vadd.f32 %v60, %v140
    %v142 = vpop.f32.mrf.mxu0
    %143 = vdwg.mxu0
    %144 = vadd.xlane.f32.xlu0 %v136
    %v145 = vpop.xlane.xlu0 %144
    %146 = vadd.xlane.f32.xlu0 %v141
    %v147 = vpop.xlane.xlu0 %146
    %v148 = vrcp.pop 128.0
    %v149 = vmul.f32 %v145, %v148
    %v150 = vmul.f32 %v147, %v148
    %v151 = vsub.f32 %v136, %v149
    %v152 = vsub.f32 %v141, %v150
    %v153 = vmul.f32 %v151, %v151
    %v154 = vmul.f32 %v152, %v152
    %155 = vadd.xlane.f32.xlu0 %v153
    %v156 = vpop.xlane.xlu0 %155
    %157 = vadd.xlane.f32.xlu0 %v154
    %v158 = vpop.xlane.xlu0 %157
    %v159 = vmul.f32 %v156, %v148
    %v160 = vmul.f32 %v158, %v148
    %v161 = vadd.f32 %v159, 1e-05
    %v162 = vadd.f32 %v160, 1e-05
    %v163 = vrsqrt.pop %v161
    %v164 = vrsqrt.pop %v162
    %v165 = vmul.f32 %v151, %v163
    %v166 = vmul.f32 %v152, %v164
    %v167 = vld [vmem:[%s3] sm:$0x1]
    %v169 = vlaneseq
    %v170 = vshrl.u32 %v169, 7
    %v171 = vsub.s32 0, %v170
    %v172 = vrot.slane %v167, %v171
    %v174 = vmul.f32 %v165, %v172
    %v175 = vmul.f32 %v166, %v172
    %v176 = vld [vmem:[%s4] sm:$0x1]
    %v178 = vlaneseq
    %v179 = vshrl.u32 %v178, 7
    %v180 = vsub.s32 0, %v179
    %v181 = vrot.slane %v176, %v180
    %v183 = vadd.f32 %v174, %v181
    %v184 = vadd.f32 %v175, %v181
    %185 = vst [vmem:[#allocation7] sm:$0xff] %v183
    %186 = vst [vmem:[#allocation7 + $0x8] sm:$0xff] %v184
    // Predicated region
    $region30: #{linear_projection.1} parent=1 // pred_check
      _
    $region31: #{linear_projection.1} parent=1 // pred_check_branch
      %188 = sbr.rel (0) target = $region33
    $region32: #{linear_projection.1} parent=1 // pred_region
      %s190 = ssub.s32 256, 256
      %191 = vsyncadd [#allocation4], %s190
      %s192 = sshll.u32 [#allocation7], 4
      %s193 = int_to_ptr.vmem [resolvable:$true] %s192
      %198 = dma.vmem_to_hbm [thread:$0]  %s193, 256, %s5, [#allocation4], 128, 128, 8
    $region33: #{linear_projection.1} parent=1 // pred_fallthru
      _
    // Predicated region
    $region34: #{linear_projection.1} parent=1 // pred_check
      _
    $region35: #{linear_projection.1} parent=1 // pred_check_branch
      %200 = sbr.rel (0) target = $region37
    $region36: #{linear_projection.1} parent=1 // pred_region
      %201 = dma.done [#allocation4], 256
    $region37: #{linear_projection.1} parent=1 // pred_fallthru
      _
    %202 = vsyncpa [#allocation3], 1
    %203 = vsyncpa [#allocation6], 1
    %204 = vsyncpa [#allocation4], 1

</llo_original>
